<compile_context>
chip_gen: v6e
topology: v6e:2x2x1
jax: 0.10.0
libtpu: 0.0.40
codegen_flags: <defaults>
</compile_context>

<pallas_src>
import jax
import jax.numpy as jnp
from jax.experimental import pallas as pl
from jax.experimental.pallas import tpu as pltpu


# ----------------------------- small helpers --------------------------------

def _round_up(x, m):
    return (x + m - 1) // m * m


def _largest_divisor_tile(total, target, unit):
    """Largest multiple of `unit` that divides `total` and is <= target."""
    best = unit
    t = unit
    while t <= min(total, target):
        if total % t == 0:
            best = t
        t += unit
    return best


def _tpu_config():
    """Per-generation VMEM budget / Mosaic limit / lane alignment / TC count."""
    kind = ""
    try:
        kind = jax.devices()[0].device_kind.lower()
    except Exception:
        pass
    MiB = 1024 * 1024
    if "v7" in kind:
        # 64 MiB VMEM per TensorCore, 2 TCs/chip; leave headroom for Mosaic
        # internal scratch and MXU result staging.
        return dict(budget=36 * MiB, limit=48 * MiB, lane=256, cores=2)
    if "v6" in kind:
        return dict(budget=96 * MiB, limit=110 * MiB, lane=256, cores=1)
    if "v5" in kind:
        return dict(budget=96 * MiB, limit=100 * MiB, lane=128, cores=1)
    # Unknown generation: conservative (v7x-sized) budget, 128-lane alignment.
    return dict(budget=36 * MiB, limit=48 * MiB, lane=128, cores=2)


def _fused_footprint(tm, in_p, hid_p, out_p, cbytes, obytes):
    """VMEM working set of the weights-resident fused kernel (conservative)."""
    return (2 * tm * in_p * cbytes          # x tile (double-buffered)
            + 2 * in_p * hid_p * cbytes     # w1 (resident; counted 2x to be safe)
            + 2 * hid_p * 4                 # b1 (f32)
            + 2 * hid_p * out_p * cbytes    # w2
            + 2 * out_p * 4                 # b2 (f32)
            + 2 * tm * out_p * obytes       # out tile
            + tm * hid_p * 4                # live f32 h
            + tm * hid_p * cbytes           # compute-dtype copy of h for fc2
            + tm * out_p * 4)               # f32 matmul result before cast


def _streamed_footprint(tm, th, in_p, out_p, cbytes, obytes):
    """VMEM working set of the hidden-streamed fallback kernel."""
    return (2 * tm * in_p * cbytes
            + 2 * in_p * th * cbytes        # w1 chunk
            + 2 * th * 4                    # b1 chunk
            + 2 * th * out_p * cbytes       # w2 chunk
            + 2 * out_p * 4                 # b2
            + 2 * tm * out_p * obytes       # out tile
            + tm * out_p * 4                # f32 accumulator scratch
            + tm * th * 4                   # live f32 h
            + tm * th * cbytes              # compute-dtype copy of h
            + tm * out_p * 4)               # f32 result before cast


# --------------------------------- kernels -----------------------------------

def _mlp_fused_kernel(x_ref, w1_ref, b1_ref, w2_ref, b2_ref, o_ref):
    # fc1 -> bias -> ReLU in f32 on the VPU; fc2 -> bias; cast once at the end.
    # TODO(synk): nn.Dropout(p=0.2) training-mode masking not implemented; identity (eval).
    h = jnp.dot(x_ref[...], w1_ref[...], preferred_element_type=jnp.float32)
    h = jnp.maximum(h + b1_ref[...], 0.0)
    out = jnp.dot(h.astype(w2_ref.dtype), w2_ref[...],
                  preferred_element_type=jnp.float32)
    o_ref[...] = (out + b2_ref[...]).astype(o_ref.dtype)


def _mlp_streamed_kernel(x_ref, w1_ref, b1_ref, w2_ref, b2_ref, o_ref, acc_ref):
    j = pl.program_id(1)  # hidden-dim (fc2 reduction) grid axis

    @pl.when(j == 0)
    def _init():
        acc_ref[...] = jnp.zeros_like(acc_ref)

    h = jnp.dot(x_ref[...], w1_ref[...], preferred_element_type=jnp.float32)
    h = jnp.maximum(h + b1_ref[...], 0.0)
    acc_ref[...] += jnp.dot(h.astype(w2_ref.dtype), w2_ref[...],
                            preferred_element_type=jnp.float32)

    @pl.when(j == pl.num_programs(1) - 1)
    def _finalize():
        o_ref[...] = (acc_ref[...] + b2_ref[...]).astype(o_ref.dtype)


# ------------------------------ parameter prep -------------------------------

def prepare_mlp_params(w1, b1, w2, b2, *, compute_dtype=jnp.bfloat16):
    """Pad + cast the weights ONCE (hoisted out of the per-forward path).

    w1: [in, hid], b1: [hid], w2: [hid, out], b2: [out] (already transposed
    relative to nn.Linear's [out, in] storage).
    """
    cfg = _tpu_config()
    lane = cfg["lane"]
    in_f, hid = w1.shape
    hid2, out_f = w2.shape
    assert hid2 == hid

    in_p = _round_up(in_f, lane)
    out_p = _round_up(out_f, lane)
    # Pad hidden so a deep (512-wide) reduction chunk always divides it when
    # the streamed fallback is needed (zero padding keeps numerics exact).
    hid_align = 512 if hid > 512 else lane
    hid_p = _round_up(hid, hid_align)

    w1p = jnp.pad(w1, ((0, in_p - in_f), (0, hid_p - hid))).astype(compute_dtype)
    w2p = jnp.pad(w2, ((0, hid_p - hid), (0, out_p - out_f))).astype(compute_dtype)
    b1p = jnp.pad(b1, (0, hid_p - hid)).reshape(1, hid_p).astype(jnp.float32)
    b2p = jnp.pad(b2, (0, out_p - out_f)).reshape(1, out_p).astype(jnp.float32)

    return dict(w1=w1p, b1=b1p, w2=w2p, b2=b2p,
                in_f=in_f, hid=hid, out_f=out_f,
                in_p=in_p, hid_p=hid_p, out_p=out_p,
                compute_dtype=jnp.dtype(compute_dtype))


# --------------------------------- wrapper -----------------------------------

def mlp_pallas(x, params, *, tile_m=None, tile_h=None, force_stream=False):
    """x: [..., in_features]; params: output of prepare_mlp_params."""
    cfg = _tpu_config()
    budget, limit, cores = cfg["budget"], cfg["limit"], cfg["cores"]

    compute_dtype = params["compute_dtype"]
    in_f, out_f = params["in_f"], params["out_f"]
    in_p, hid_p, out_p = params["in_p"], params["hid_p"], params["out_p"]
    w1p, b1p, w2p, b2p = params["w1"], params["b1"], params["w2"], params["b2"]

    assert x.shape[-1] == in_f
    lead_shape = x.shape[:-1]
    x2d = x.reshape(-1, in_f)
    M = x2d.shape[0]

    cbytes = jnp.dtype(compute_dtype).itemsize
    obytes = jnp.dtype(x.dtype).itemsize
    # bf16 packs 2 rows per sublane -> keep row tiles 16-aligned; f32 -> 8.
    row_align = 16 if cbytes <= 2 else 8

    # --- row tile selection (protect tm: weight re-streams scale with m_p/tm) -
    if tile_m is not None:
        tm = tile_m
    elif cbytes <= 2:
        tm = 1024 if budget >= 64 * 1024 * 1024 else 512
    else:
        tm = 512 if budget >= 64 * 1024 * 1024 else 256
    tm = min(tm, _round_up(M, row_align))
    tm = max(row_align, tm - (tm % row_align))

    # Keep >= 2 row tiles on 2-TC chips so the "parallel" axis shards across
    # both TensorCores (only worth it when M is large enough).
    if cores >= 2 and M >= 512 and _round_up(M, tm) // tm < 2:
        tm = max(row_align, _round_up((M + 1) // 2, row_align))

    # --- fast path: weights fully resident in VMEM ----------------------------
    use_fused = (not force_stream) and (
        _fused_footprint(row_align, in_p, hid_p, out_p, cbytes, obytes) <= budget)

    th = None
    if use_fused:
        # Weights are DMAed once regardless of grid[0]; shrinking tm here only
        # adds ~0.35us/step, so trimming it to fit the budget is cheap.
        while (tm > row_align
               and _fused_footprint(tm, in_p, hid_p, out_p, cbytes, obytes) > budget):
            tm = max(row_align, (tm // 2) - ((tm // 2) % row_align))
    else:
        th = tile_h or _largest_divisor_tile(hid_p, 512, 128)
        assert hid_p % th == 0
        # Shrink the hidden chunk first and preserve tm; only shrink the row
        # tile as a last resort (weight HBM traffic ~ m_p/tm).
        while _streamed_footprint(tm, th, in_p, out_p, cbytes, obytes) > budget:
            if th > 128 and hid_p % (th // 2) == 0:
                th //= 2
            elif tm > row_align:
                tm = max(row_align, (tm // 2) - ((tm // 2) % row_align))
            else:
                break

    m_p = _round_up(M, tm)

    # Per-call work on x only (weights/biases were padded+cast once at prep).
    xp = jnp.pad(x2d, ((0, m_p - M), (0, in_p - in_f))).astype(compute_dtype)

    flops = 2 * m_p * (in_p * hid_p + hid_p * out_p)

    if use_fused:
        grid = (m_p // tm,)
        bytes_accessed = (m_p * in_p * cbytes
                          + (in_p * hid_p + hid_p * out_p) * cbytes
                          + (hid_p + out_p) * 4
                          + m_p * out_p * obytes)
        out2d = pl.pallas_call(
            _mlp_fused_kernel,
            out_shape=jax.ShapeDtypeStruct((m_p, out_p), x.dtype),
            grid_spec=pltpu.PrefetchScalarGridSpec(
                num_scalar_prefetch=0,
                grid=grid,
                in_specs=[
                    pl.BlockSpec((tm, in_p), lambda i: (i, 0)),      # x tile
                    pl.BlockSpec((in_p, hid_p), lambda i: (0, 0)),   # w1 resident
                    pl.BlockSpec((1, hid_p), lambda i: (0, 0)),      # b1 resident
                    pl.BlockSpec((hid_p, out_p), lambda i: (0, 0)),  # w2 resident
                    pl.BlockSpec((1, out_p), lambda i: (0, 0)),      # b2 resident
                ],
                out_specs=pl.BlockSpec((tm, out_p), lambda i: (i, 0)),
            ),
            compiler_params=pltpu.CompilerParams(
                dimension_semantics=("parallel",),
                vmem_limit_bytes=limit),
            cost_estimate=pl.CostEstimate(flops=flops, transcendentals=0,
                                          bytes_accessed=bytes_accessed),
        )(xp, w1p, b1p, w2p, b2p)
    else:
        grid = (m_p // tm, hid_p // th)
        bytes_accessed = (m_p * in_p * cbytes
                          + grid[0] * (in_p * hid_p + hid_p * out_p) * cbytes
                          + grid[0] * (hid_p + out_p) * 4
                          + m_p * out_p * obytes)
        out2d = pl.pallas_call(
            _mlp_streamed_kernel,
            out_shape=jax.ShapeDtypeStruct((m_p, out_p), x.dtype),
            grid_spec=pltpu.PrefetchScalarGridSpec(
                num_scalar_prefetch=0,
                grid=grid,
                in_specs=[
                    pl.BlockSpec((tm, in_p), lambda i, j: (i, 0)),     # x tile
                    pl.BlockSpec((in_p, th), lambda i, j: (0, j)),     # w1 chunk
                    pl.BlockSpec((1, th), lambda i, j: (0, j)),        # b1 chunk
                    pl.BlockSpec((th, out_p), lambda i, j: (j, 0)),    # w2 chunk
                    pl.BlockSpec((1, out_p), lambda i, j: (0, 0)),     # b2
                ],
                out_specs=pl.BlockSpec((tm, out_p), lambda i, j: (i, 0)),
                scratch_shapes=[pltpu.VMEM((tm, out_p), jnp.float32)],
            ),
            compiler_params=pltpu.CompilerParams(
                dimension_semantics=("parallel", "arbitrary"),
                vmem_limit_bytes=limit),
            cost_estimate=pl.CostEstimate(flops=flops, transcendentals=0,
                                          bytes_accessed=bytes_accessed),
        )(xp, w1p, b1p, w2p, b2p)

    out2d = out2d[:M, :out_f]
    return out2d.reshape(*lead_shape, out_f)


# ------------------------------- init / test ---------------------------------

def init_mlp_params(key, in_features, hidden_features, out_features,
                    dtype=jnp.float32):
    """Deterministic synthetic init mimicking nn.Linear's uniform fan-in init."""
    k1, k2, k3, k4 = jax.random.split(key, 4)
    bound1 = 1.0 / jnp.sqrt(in_features)
    bound2 = 1.0 / jnp.sqrt(hidden_features)
    # stored pre-transposed: [in, hid] and [hid, out]
    w1 = jax.random.uniform(k1, (in_features, hidden_features), dtype,
                            minval=-bound1, maxval=bound1)
    b1 = jax.random.uniform(k2, (hidden_features,), dtype,
                            minval=-bound1, maxval=bound1)
    w2 = jax.random.uniform(k3, (hidden_features, out_features), dtype,
                            minval=-bound2, maxval=bound2)
    b2 = jax.random.uniform(k4, (out_features,), dtype,
                            minval=-bound2, maxval=bound2)
    return w1, b1, w2, b2


if __name__ == "__main__":
    # Small shapes consistent with an MLP over a token sequence:
    # batch=2, seq=8, in_features=32, hidden=64, out_features=32.
    B, S, IN, HID, OUT = 2, 8, 32, 64, 32

    key = jax.random.PRNGKey(0)
    kx, kp = jax.random.split(key)
    x = jax.random.normal(kx, (B, S, IN), jnp.float32)
    w1, b1, w2, b2 = init_mlp_params(kp, IN, HID, OUT)

    ref_f32 = jnp.maximum(x @ w1 + b1, 0.0) @ w2 + b2

    # --- f32 compute path: exact check (weights-resident fused kernel) -------
    p_f32 = prepare_mlp_params(w1, b1, w2, b2, compute_dtype=jnp.float32)
    out_f32 = jax.block_until_ready(mlp_pallas(x, p_f32))
    assert out_f32.shape == (B, S, OUT)
    assert jnp.allclose(out_f32, ref_f32, atol=1e-4, rtol=1e-4)

    # --- bf16 fast path (default): check against a bf16-cast reference -------
    p_bf16 = prepare_mlp_params(w1, b1, w2, b2)  # compute_dtype=bf16
    out_bf16 = jax.block_until_ready(mlp_pallas(x, p_bf16))
    xb = x.astype(jnp.bfloat16)
    h_ref = jnp.maximum(
        jnp.dot(xb, w1.astype(jnp.bfloat16),
                preferred_element_type=jnp.float32) + b1, 0.0)
    ref_bf16 = jnp.dot(h_ref.astype(jnp.bfloat16), w2.astype(jnp.bfloat16),
                       preferred_element_type=jnp.float32) + b2
    assert out_bf16.shape == (B, S, OUT)
    assert jnp.allclose(out_bf16, ref_bf16, atol=5e-2, rtol=5e-2)
    assert jnp.allclose(out_bf16, ref_f32, atol=1e-1, rtol=1e-1)

    # --- hidden-streamed fallback path (exercised explicitly for coverage) ---
    out_stream = jax.block_until_ready(mlp_pallas(x, p_f32, force_stream=True))
    assert jnp.allclose(out_stream, ref_f32, atol=1e-4, rtol=1e-4)

    print("KERNEL_OK")
</pallas_src>

<mosaic_0001>
module attributes {stable_mosaic.version = 11 : i64} {
  func.func @_mlp_fused_kernel(%arg0: i32, %arg1: memref<16x128xf32, #tpu.memory_space<vmem>>, %arg2: memref<128x128xf32, #tpu.memory_space<vmem>>, %arg3: memref<1x128xf32, #tpu.memory_space<vmem>>, %arg4: memref<128x128xf32, #tpu.memory_space<vmem>>, %arg5: memref<1x128xf32, #tpu.memory_space<vmem>>, %arg6: memref<16x128xf32, #tpu.memory_space<vmem>>) attributes {dimension_semantics = [#tpu.dimension_semantics<parallel>], iteration_bounds = array<i64: 1>, scalar_prefetch = 0 : i64, scratch_operands = 0 : i64, tpu.core_type = #tpu.core_type<tc>, window_params = [{transform_indices = @transform_0, window_bounds = array<i64: 16, 128>}, {pipeline_mode = #tpu.pipeline_mode<synchronous>, transform_indices = @transform_1, window_bounds = array<i64: 128, 128>}, {pipeline_mode = #tpu.pipeline_mode<synchronous>, transform_indices = @transform_2, window_bounds = array<i64: 1, 128>}, {pipeline_mode = #tpu.pipeline_mode<synchronous>, transform_indices = @transform_3, window_bounds = array<i64: 128, 128>}, {pipeline_mode = #tpu.pipeline_mode<synchronous>, transform_indices = @transform_4, window_bounds = array<i64: 1, 128>}, {transform_indices = @transform_5, window_bounds = array<i64: 16, 128>}]} {
    %c0 = arith.constant 0 : index
    %c0_0 = arith.constant 0 : index
    %0 = vector.load %arg1[%c0, %c0_0] : memref<16x128xf32, #tpu.memory_space<vmem>>, vector<16x128xf32>
    %c0_1 = arith.constant 0 : index
    %c0_2 = arith.constant 0 : index
    %1 = vector.load %arg2[%c0_1, %c0_2] : memref<128x128xf32, #tpu.memory_space<vmem>>, vector<128x128xf32>
    %cst = arith.constant dense<0.000000e+00> : vector<16x128xf32>
    %2 = tpu.matmul %0, %1, %cst {dimension_numbers = #tpu.dot_dimension_numbers<[1], [0], [0], [1], [0, 0, 1, 1], [], []>} : vector<16x128xf32>, vector<128x128xf32>, vector<16x128xf32> -> vector<16x128xf32>
    %c0_3 = arith.constant 0 : index
    %c0_4 = arith.constant 0 : index
    %3 = vector.load %arg3[%c0_3, %c0_4] : memref<1x128xf32, #tpu.memory_space<vmem>>, vector<1x128xf32>
    %4 = vector.broadcast %3 : vector<1x128xf32> to vector<16x128xf32>
    %5 = arith.addf %2, %4 : vector<16x128xf32>
    %cst_5 = arith.constant 0.000000e+00 : f32
    %6 = vector.broadcast %cst_5 : f32 to vector<16x128xf32>
    %7 = arith.maximumf %5, %6 : vector<16x128xf32>
    %c0_6 = arith.constant 0 : index
    %c0_7 = arith.constant 0 : index
    %8 = vector.load %arg4[%c0_6, %c0_7] : memref<128x128xf32, #tpu.memory_space<vmem>>, vector<128x128xf32>
    %cst_8 = arith.constant dense<0.000000e+00> : vector<16x128xf32>
    %9 = tpu.matmul %7, %8, %cst_8 {dimension_numbers = #tpu.dot_dimension_numbers<[1], [0], [0], [1], [0, 0, 1, 1], [], []>} : vector<16x128xf32>, vector<128x128xf32>, vector<16x128xf32> -> vector<16x128xf32>
    %c0_9 = arith.constant 0 : index
    %c0_10 = arith.constant 0 : index
    %10 = vector.load %arg5[%c0_9, %c0_10] : memref<1x128xf32, #tpu.memory_space<vmem>>, vector<1x128xf32>
    %11 = vector.broadcast %10 : vector<1x128xf32> to vector<16x128xf32>
    %12 = arith.addf %9, %11 : vector<16x128xf32>
    %c0_11 = arith.constant 0 : index
    %c0_12 = arith.constant 0 : index
    %13 = vector.load %arg6[%c0_11, %c0_12] : memref<16x128xf32, #tpu.memory_space<vmem>>, vector<16x128xf32>
    tpu.vector_store %arg6[%c0_11, %c0_12], %12 {strides = array<i32>} : memref<16x128xf32, #tpu.memory_space<vmem>>, vector<16x128xf32>,
    return
  }
  func.func @transform_0(%arg0: i32) -> (i32, i32) {
    %c0_i32 = arith.constant 0 : i32
    %c0_i32_0 = arith.constant 0 : i32
    return %arg0, %c0_i32 : i32, i32
  }
  func.func @transform_1(%arg0: i32) -> (i32, i32) {
    %c0_i32 = arith.constant 0 : i32
    %c0_i32_0 = arith.constant 0 : i32
    %c0_i32_1 = arith.constant 0 : i32
    return %c0_i32, %c0_i32_0 : i32, i32
  }
  func.func @transform_2(%arg0: i32) -> (i32, i32) {
    %c0_i32 = arith.constant 0 : i32
    %c0_i32_0 = arith.constant 0 : i32
    %c0_i32_1 = arith.constant 0 : i32
    return %c0_i32, %c0_i32_0 : i32, i32
  }
  func.func @transform_3(%arg0: i32) -> (i32, i32) {
    %c0_i32 = arith.constant 0 : i32
    %c0_i32_0 = arith.constant 0 : i32
    %c0_i32_1 = arith.constant 0 : i32
    return %c0_i32, %c0_i32_0 : i32, i32
  }
  func.func @transform_4(%arg0: i32) -> (i32, i32) {
    %c0_i32 = arith.constant 0 : i32
    %c0_i32_0 = arith.constant 0 : i32
    %c0_i32_1 = arith.constant 0 : i32
    return %c0_i32, %c0_i32_0 : i32, i32
  }
  func.func @transform_5(%arg0: i32) -> (i32, i32) {
    %c0_i32 = arith.constant 0 : i32
    %c0_i32_0 = arith.constant 0 : i32
    return %arg0, %c0_i32 : i32, i32
  }
}

</mosaic_0001>

<llo_original>
// kernel: tpu_custom_call.1
$region0: #{tpu_custom_call.1}
  #allocation0 [shape = 'u32[]', space=smem, size = 0x4, offset = 0x4, fixed_abs, tag = 'smem constant byte address 0x4 - core index']
  #allocation1 [shape = 'u32[144,128]{1,0:T(1,128)}', space=vmem, size = 0x12000, scoped, tag = 'internal scratch']
  %s0 = inlined_call_operand.hbm [shape: f32[16,128], index: 0, kind: input, shape index: {}]
  %s1 = inlined_call_operand.hbm [shape: f32[128,128], index: 1, kind: input, shape index: {}]
  %s2 = inlined_call_operand.vmem [shape: f32[1,128], index: 2, kind: input, shape index: {}]
  %s3 = inlined_call_operand.hbm [shape: f32[128,128], index: 3, kind: input, shape index: {}]
  %s4 = inlined_call_operand.vmem [shape: f32[1,128], index: 4, kind: input, shape index: {}]
  %s5 = inlined_call_operand.hbm [shape: f32[16,128], index: 5, kind: output, shape index: {}]
  %s6 = sld [smem:[#allocation0]]
  $region42: #{tpu_custom_call.1} parent=0
    _
  %s8 = ssub.s32 1, %s6
  %s9 = scalar_select 0, %s8, %s6
  $region1: #{tpu_custom_call.1} parent=0
    #allocation2 [shape = 'u8[8192]{0}', space=vmem, size = 0x2000, scoped, tag = 'input window, operand 0, single buffered']
    #allocation3 [shape = 's32[1]{0}', space=sflag, size = 0x4, scoped, tag = 'scoped memory for tpu_custom_call.1']
    #allocation4 [shape = 's32[1]{0}', space=sflag, size = 0x4, scoped, tag = 'scoped memory for tpu_custom_call.1']
    #allocation5 [shape = 'u8[65536]{0}', space=vmem, size = 0x10000, scoped, tag = 'input window, operand 1, single buffered']
    #allocation6 [shape = 's32[1]{0}', space=sflag, size = 0x4, scoped, tag = 'scoped memory for tpu_custom_call.1']
    #allocation7 [shape = 'u8[65536]{0}', space=vmem, size = 0x10000, scoped, tag = 'input window, operand 3, single buffered']
    #allocation8 [shape = 'u8[8192]{0}', space=vmem, size = 0x2000, scoped, tag = 'output window, operand 0, single buffered']
    %10 = vsyncpa [#allocation3], 0
    %11 = vsyncpa [#allocation6], 0
    %12 = vsyncpa [#allocation4], 0
    // Predicated region
    $region2: #{tpu_custom_call.1} parent=1 // pred_check
      _
    $region3: #{tpu_custom_call.1} parent=1 // pred_check_branch
      %14 = sbr.rel (0) target = $region5
    $region4: #{tpu_custom_call.1} parent=1 // pred_region
      %s16 = ssub.s32 256, 256
      %17 = vsyncadd [#allocation3], %s16
      %s18 = sshll.u32 [#allocation2], 4
      %s19 = int_to_ptr.vmem [resolvable:$true] %s18
      %24 = dma.hbm_to_vmem [thread:$0]  %s0, 256, %s19, [#allocation3], 128, 128, 8
    $region5: #{tpu_custom_call.1} parent=1 // pred_fallthru
      _
    // Predicated region
    $region6: #{tpu_custom_call.1} parent=1 // pred_check
      _
    $region7: #{tpu_custom_call.1} parent=1 // pred_check_branch
      %26 = sbr.rel (0) target = $region9
    $region8: #{tpu_custom_call.1} parent=1 // pred_region
      %s28 = ssub.s32 2048, 2048
      %29 = vsyncadd [#allocation6], %s28
      %s30 = sshll.u32 [#allocation5], 4
      %s31 = int_to_ptr.vmem [resolvable:$true] %s30
      %36 = dma.hbm_to_vmem [thread:$0]  %s1, 2048, %s31, [#allocation6], 128, 128, 8
    $region9: #{tpu_custom_call.1} parent=1 // pred_fallthru
      _
    // Predicated region
    $region10: #{tpu_custom_call.1} parent=1 // pred_check
      _
    $region11: #{tpu_custom_call.1} parent=1 // pred_check_branch
      %38 = sbr.rel (0) target = $region13
    $region12: #{tpu_custom_call.1} parent=1 // pred_region
      _
    $region13: #{tpu_custom_call.1} parent=1 // pred_fallthru
      _
    // Predicated region
    $region14: #{tpu_custom_call.1} parent=1 // pred_check
      _
    $region15: #{tpu_custom_call.1} parent=1 // pred_check_branch
      %40 = sbr.rel (0) target = $region17
    $region16: #{tpu_custom_call.1} parent=1 // pred_region
      %s42 = ssub.s32 2048, 2048
      %43 = vsyncadd [#allocation6], %s42
      %s44 = sshll.u32 [#allocation7], 4
      %s45 = int_to_ptr.vmem [resolvable:$true] %s44
      %50 = dma.hbm_to_vmem [thread:$0]  %s3, 2048, %s45, [#allocation6], 128, 128, 8
    $region17: #{tpu_custom_call.1} parent=1 // pred_fallthru
      _
    // Predicated region
    $region18: #{tpu_custom_call.1} parent=1 // pred_check
      _
    $region19: #{tpu_custom_call.1} parent=1 // pred_check_branch
      %52 = sbr.rel (0) target = $region21
    $region20: #{tpu_custom_call.1} parent=1 // pred_region
      _
    $region21: #{tpu_custom_call.1} parent=1 // pred_fallthru
      _
    // Predicated region
    $region22: #{tpu_custom_call.1} parent=1 // pred_check
      _
    $region23: #{tpu_custom_call.1} parent=1 // pred_check_branch
      %54 = sbr.rel (0) target = $region25
    $region24: #{tpu_custom_call.1} parent=1 // pred_region
      %55 = dma.done [#allocation3], 256
    $region25: #{tpu_custom_call.1} parent=1 // pred_fallthru
      _
    // Predicated region
    $region26: #{tpu_custom_call.1} parent=1 // pred_check
      _
    $region27: #{tpu_custom_call.1} parent=1 // pred_check_branch
      %57 = sbr.rel (0) target = $region29
    $region28: #{tpu_custom_call.1} parent=1 // pred_region
      %58 = dma.done [#allocation6], 2048
    $region29: #{tpu_custom_call.1} parent=1 // pred_fallthru
      _
    // Predicated region
    $region30: #{tpu_custom_call.1} parent=1 // pred_check
      _
    $region31: #{tpu_custom_call.1} parent=1 // pred_check_branch
      %60 = sbr.rel (0) target = $region33
    $region32: #{tpu_custom_call.1} parent=1 // pred_region
      %61 = dma.done [#allocation6], 2048
    $region33: #{tpu_custom_call.1} parent=1 // pred_fallthru
      _
    %v62 = vld [vmem:[#allocation2] sm:$0xff]
    %v63 = vld [vmem:[#allocation2 + $0x8] sm:$0xff]
    %v64 = vld [vmem:[#allocation5] sm:$0xff]
    %v65 = vld [vmem:[#allocation5 + $0x8] sm:$0xff]
    %v66 = vld [vmem:[#allocation5 + $0x10] sm:$0xff]
    %v67 = vld [vmem:[#allocation5 + $0x18] sm:$0xff]
    %v68 = vld [vmem:[#allocation5 + $0x20] sm:$0xff]
    %v69 = vld [vmem:[#allocation5 + $0x28] sm:$0xff]
    %v70 = vld [vmem:[#allocation5 + $0x30] sm:$0xff]
    %v71 = vld [vmem:[#allocation5 + $0x38] sm:$0xff]
    %v72 = vld [vmem:[#allocation5 + $0x40] sm:$0xff]
    %v73 = vld [vmem:[#allocation5 + $0x48] sm:$0xff]
    %v74 = vld [vmem:[#allocation5 + $0x50] sm:$0xff]
    %v75 = vld [vmem:[#allocation5 + $0x58] sm:$0xff]
    %v76 = vld [vmem:[#allocation5 + $0x60] sm:$0xff]
    %v77 = vld [vmem:[#allocation5 + $0x68] sm:$0xff]
    %v78 = vld [vmem:[#allocation5 + $0x70] sm:$0xff]
    %v79 = vld [vmem:[#allocation5 + $0x78] sm:$0xff]
    %v80 = vld [vmem:[%s2] sm:$0x1]
    %v82 = vlaneseq
    %v83 = vshrl.u32 %v82, 7
    %v84 = vsub.s32 0, %v83
    %v85 = vrot.slane %v80, %v84
    %87 = vmatprep.subr.mxu0 0.0
    %88 = vmatpush1.msra.mxu0 %v79
    %89 = vmatprep.subr.mxu0 0.0
    %90 = vmatpush1.msra.mxu0 %v78
    %91 = vmatprep.subr.mxu0 0.0
    %92 = vmatpush1.msra.mxu0 %v77
    %93 = vmatprep.subr.mxu0 0.0
    %94 = vmatpush1.msra.mxu0 %v76
    %95 = vmatprep.subr.mxu0 0.0
    %96 = vmatpush1.msra.mxu0 %v75
    %97 = vmatprep.subr.mxu0 0.0
    %98 = vmatpush1.msra.mxu0 %v74
    %99 = vmatprep.subr.mxu0 0.0
    %100 = vmatpush1.msra.mxu0 %v73
    %101 = vmatprep.subr.mxu0 0.0
    %102 = vmatpush1.msra.mxu0 %v72
    %103 = vmatprep.subr.mxu0 0.0
    %104 = vmatpush1.msra.mxu0 %v71
    %105 = vmatprep.subr.mxu0 0.0
    %106 = vmatpush1.msra.mxu0 %v70
    %107 = vmatprep.subr.mxu0 0.0
    %108 = vmatpush1.msra.mxu0 %v69
    %109 = vmatprep.subr.mxu0 0.0
    %110 = vmatpush1.msra.mxu0 %v68
    %111 = vmatprep.subr.mxu0 0.0
    %112 = vmatpush1.msra.mxu0 %v67
    %113 = vmatprep.subr.mxu0 0.0
    %114 = vmatpush1.msra.mxu0 %v66
    %115 = vmatprep.subr.mxu0 0.0
    %116 = vmatpush1.msra.mxu0 %v65
    %117 = vmatprep.subr.mxu0 0.0
    %118 = vmatpush1.msra.mxu0 %v64
    %119 = vmatprep.subr.mxu0 0.0
    %120 = vmatpush2.msra.mxu0 0.0
    %121 = vmatprep.subr.mxu0 0.0
    %122 = vmatpush2.msra.mxu0 0.0
    %123 = vmatprep.subr.mxu0 0.0
    %124 = vmatpush2.msra.mxu0 0.0
    %125 = vmatprep.subr.mxu0 0.0
    %126 = vmatpush2.msra.mxu0 0.0
    %127 = vmatprep.subr.mxu0 0.0
    %128 = vmatpush2.msra.mxu0 0.0
    %129 = vmatprep.subr.mxu0 0.0
    %130 = vmatpush2.msra.mxu0 0.0
    %131 = vmatprep.subr.mxu0 0.0
    %132 = vmatpush2.msra.mxu0 0.0
    %133 = vmatprep.subr.mxu0 0.0
    %134 = vmatpush2.msra.mxu0 0.0
    %135 = vmatprep.subr.mxu0 0.0
    %136 = vmatpush2.msra.mxu0 0.0
    %137 = vmatprep.subr.mxu0 0.0
    %138 = vmatpush2.msra.mxu0 0.0
    %139 = vmatprep.subr.mxu0 0.0
    %140 = vmatpush2.msra.mxu0 0.0
    %141 = vmatprep.subr.mxu0 0.0
    %142 = vmatpush2.msra.mxu0 0.0
    %143 = vmatprep.subr.mxu0 0.0
    %144 = vmatpush2.msra.mxu0 0.0
    %145 = vmatprep.subr.mxu0 0.0
    %146 = vmatpush2.msra.mxu0 0.0
    %147 = vmatprep.subr.mxu0 0.0
    %148 = vmatpush2.msra.mxu0 0.0
    %149 = vmatprep.subr.mxu0 0.0
    %150 = vmatpush2.msra.mxu0 0.0
    %151 = vmatprep.mubr.f32.mxu0 0.0
    %152 = vmatmul.mubr.f32.gmra.mxu0 %v62
    %v153 = vpop.f32.mrf.mxu0
    %v154 = vadd.f32 %v85, %v153
    %v155 = vpop.f32.mrf.mxu0
    %156 = vmatprep.mubr.f32.mxu0 0.0
    %157 = vmatmul.mubr.f32.gmra.mxu0 %v63
    %v158 = vpop.f32.mrf.mxu0
    %v159 = vadd.f32 %v85, %v158
    %v160 = vpop.f32.mrf.mxu0
    %161 = vdwg.mxu0
    %v162 = vmax.f32 %v154, 0.0
    %v163 = vmax.f32 %v159, 0.0
    %v164 = vld [vmem:[#allocation7] sm:$0xff]
    %v165 = vld [vmem:[#allocation7 + $0x8] sm:$0xff]
    %v166 = vld [vmem:[#allocation7 + $0x10] sm:$0xff]
    %v167 = vld [vmem:[#allocation7 + $0x18] sm:$0xff]
    %v168 = vld [vmem:[#allocation7 + $0x20] sm:$0xff]
    %v169 = vld [vmem:[#allocation7 + $0x28] sm:$0xff]
    %v170 = vld [vmem:[#allocation7 + $0x30] sm:$0xff]
    %v171 = vld [vmem:[#allocation7 + $0x38] sm:$0xff]
    %v172 = vld [vmem:[#allocation7 + $0x40] sm:$0xff]
    %v173 = vld [vmem:[#allocation7 + $0x48] sm:$0xff]
    %v174 = vld [vmem:[#allocation7 + $0x50] sm:$0xff]
    %v175 = vld [vmem:[#allocation7 + $0x58] sm:$0xff]
    %v176 = vld [vmem:[#allocation7 + $0x60] sm:$0xff]
    %v177 = vld [vmem:[#allocation7 + $0x68] sm:$0xff]
    %v178 = vld [vmem:[#allocation7 + $0x70] sm:$0xff]
    %v179 = vld [vmem:[#allocation7 + $0x78] sm:$0xff]
    %v180 = vld [vmem:[%s4] sm:$0x1]
    %v182 = vlaneseq
    %v183 = vshrl.u32 %v182, 7
    %v184 = vsub.s32 0, %v183
    %v185 = vrot.slane %v180, %v184
    %187 = vmatprep.subr.mxu0 0.0
    %188 = vmatpush1.msra.mxu0 %v179
    %189 = vmatprep.subr.mxu0 0.0
    %190 = vmatpush1.msra.mxu0 %v178
    %191 = vmatprep.subr.mxu0 0.0
    %192 = vmatpush1.msra.mxu0 %v177
    %193 = vmatprep.subr.mxu0 0.0
    %194 = vmatpush1.msra.mxu0 %v176
    %195 = vmatprep.subr.mxu0 0.0
    %196 = vmatpush1.msra.mxu0 %v175
    %197 = vmatprep.subr.mxu0 0.0
    %198 = vmatpush1.msra.mxu0 %v174
    %199 = vmatprep.subr.mxu0 0.0
    %200 = vmatpush1.msra.mxu0 %v173
    %201 = vmatprep.subr.mxu0 0.0
    %202 = vmatpush1.msra.mxu0 %v172
    %203 = vmatprep.subr.mxu0 0.0
    %204 = vmatpush1.msra.mxu0 %v171
    %205 = vmatprep.subr.mxu0 0.0
    %206 = vmatpush1.msra.mxu0 %v170
    %207 = vmatprep.subr.mxu0 0.0
    %208 = vmatpush1.msra.mxu0 %v169
    %209 = vmatprep.subr.mxu0 0.0
    %210 = vmatpush1.msra.mxu0 %v168
    %211 = vmatprep.subr.mxu0 0.0
    %212 = vmatpush1.msra.mxu0 %v167
    %213 = vmatprep.subr.mxu0 0.0
    %214 = vmatpush1.msra.mxu0 %v166
    %215 = vmatprep.subr.mxu0 0.0
    %216 = vmatpush1.msra.mxu0 %v165
    %217 = vmatprep.subr.mxu0 0.0
    %218 = vmatpush1.msra.mxu0 %v164
    %219 = vmatprep.subr.mxu0 0.0
    %220 = vmatpush2.msra.mxu0 0.0
    %221 = vmatprep.subr.mxu0 0.0
    %222 = vmatpush2.msra.mxu0 0.0
    %223 = vmatprep.subr.mxu0 0.0
    %224 = vmatpush2.msra.mxu0 0.0
    %225 = vmatprep.subr.mxu0 0.0
    %226 = vmatpush2.msra.mxu0 0.0
    %227 = vmatprep.subr.mxu0 0.0
    %228 = vmatpush2.msra.mxu0 0.0
    %229 = vmatprep.subr.mxu0 0.0
    %230 = vmatpush2.msra.mxu0 0.0
    %231 = vmatprep.subr.mxu0 0.0
    %232 = vmatpush2.msra.mxu0 0.0
    %233 = vmatprep.subr.mxu0 0.0
    %234 = vmatpush2.msra.mxu0 0.0
    %235 = vmatprep.subr.mxu0 0.0
    %236 = vmatpush2.msra.mxu0 0.0
    %237 = vmatprep.subr.mxu0 0.0
    %238 = vmatpush2.msra.mxu0 0.0
    %239 = vmatprep.subr.mxu0 0.0
    %240 = vmatpush2.msra.mxu0 0.0
    %241 = vmatprep.subr.mxu0 0.0
    %242 = vmatpush2.msra.mxu0 0.0
    %243 = vmatprep.subr.mxu0 0.0
    %244 = vmatpush2.msra.mxu0 0.0
    %245 = vmatprep.subr.mxu0 0.0
    %246 = vmatpush2.msra.mxu0 0.0
    %247 = vmatprep.subr.mxu0 0.0
    %248 = vmatpush2.msra.mxu0 0.0
    %249 = vmatprep.subr.mxu0 0.0
    %250 = vmatpush2.msra.mxu0 0.0
    %251 = vmatprep.mubr.f32.mxu0 0.0
    %252 = vmatmul.mubr.f32.gmra.mxu0 %v162
    %v253 = vpop.f32.mrf.mxu0
    %v254 = vadd.f32 %v185, %v253
    %v255 = vpop.f32.mrf.mxu0
    %256 = vmatprep.mubr.f32.mxu0 0.0
    %257 = vmatmul.mubr.f32.gmra.mxu0 %v163
    %v258 = vpop.f32.mrf.mxu0
    %v259 = vadd.f32 %v185, %v258
    %v260 = vpop.f32.mrf.mxu0
    %261 = vdwg.mxu0
    %262 = vst [vmem:[#allocation8] sm:$0xff] %v254
    %263 = vst [vmem:[#allocation8 + $0x8] sm:$0xff] %v259
    // Predicated region
    $region34: #{tpu_custom_call.1} parent=1 // pred_check
      _
    $region35: #{tpu_custom_call.1} parent=1 // pred_check_branch
      %265 = sbr.rel (0) target = $region37
    $region36: #{tpu_custom_call.1} parent=1 // pred_region
      %s267 = ssub.s32 256, 256
      %268 = vsyncadd [#allocation4], %s267
      %s269 = sshll.u32 [#allocation8], 4
      %s270 = int_to_ptr.vmem [resolvable:$true] %s269
      %275 = dma.vmem_to_hbm [thread:$0]  %s270, 256, %s5, [#allocation4], 128, 128, 8
    $region37: #{tpu_custom_call.1} parent=1 // pred_fallthru
      _
    // Predicated region
    $region38: #{tpu_custom_call.1} parent=1 // pred_check
      _
    $region39: #{tpu_custom_call.1} parent=1 // pred_check_branch
      %277 = sbr.rel (0) target = $region41
    $region40: #{tpu_custom_call.1} parent=1 // pred_region
      %278 = dma.done [#allocation4], 256
    $region41: #{tpu_custom_call.1} parent=1 // pred_fallthru
      _
    %279 = vsyncpa [#allocation3], 1
    %280 = vsyncpa [#allocation6], 1
    %281 = vsyncpa [#allocation4], 1

</llo_original>
